<compile_context>
chip_gen: v6e
topology: v6e:2x2x1
jax: 0.10.0
libtpu: 0.0.40
codegen_flags: <defaults>
</compile_context>

<pallas_src>
import jax
import jax.numpy as jnp
from jax import lax
from jax.experimental import pallas as pl
from jax.experimental.pallas import tpu as pltpu

HP = 64           # hidden size padded 50 -> 64 lanes
B_TILE_MAX = 128  # cap batch tile at 128 rows (MXU sublane fill, no vreg spill)


def rnn_wavefront_kernel(a_ref,    # (T+2, B_TILE, 3*HP) xproj + bias schedule
                         w_ref,    # (3*HP, 3*HP) block-banded recurrent weight
                         out_ref): # (B_TILE, HP) last-step layer-3 hidden
    steps, bt, w3 = a_ref.shape
    hp = w3 // 3

    # Wavefront step 0: state is all-zero, so the recurrent dot is skipped.
    h = jnp.tanh(a_ref[0])

    # Steps 1..T+1: one fused block-banded MXU dot + one add + one tanh per
    # serial chain unit.  Static Python unroll (T is small and per-step
    # addends use static indices).
    for s in range(1, steps):
        h = jnp.tanh(
            jnp.dot(h, w_ref[...], preferred_element_type=jnp.float32)
            + a_ref[s])

    # Layer-3 hidden at the last timestep is the top HP lanes of the state.
    out_ref[...] = h[:, 2 * hp:]


def _batch_tiling(batch):
    """Pick (batch_tile, padded_batch): 8-aligned tiles of at most 128 rows,
    and at least 2 grid tiles when possible so both v7x TensorCores get work."""
    b8 = ((batch + 7) // 8) * 8
    if b8 <= 8:
        return 8, 16
    bt = min(B_TILE_MAX, ((b8 // 2 + 7) // 8) * 8)
    b_pad = ((b8 + bt - 1) // bt) * bt
    return bt, b_pad


def multi_feature_rnn_forward(x, kp):
    """x: (B, T, input_size) float32. Returns (B, output_size) float32."""
    B, T, _ = x.shape
    hp = kp["w1x"].shape[1]
    H = kp["fc_w"].shape[1]
    bt, b_pad = _batch_tiling(B)

    # Layer-1 input projection for every timestep as one XLA GEMM (off the
    # serial critical path), time-major.  Pad: 2 extra drain timesteps,
    # batch -> b_pad, lanes hp -> 3*hp (wavefront width).
    xproj = jnp.einsum("bti,ih->tbh", x, kp["w1x"]) + kp["b1"]   # (T, B, hp)
    addend = jnp.pad(xproj, ((0, 2), (0, b_pad - B), (0, 2 * hp)))

    # Per-wavefront-step bias schedule: layer-2 bias from step 1, layer-3 bias
    # from step 2 (layer-1 bias is already folded into xproj).
    zH = jnp.zeros((hp,), jnp.float32)
    bias_rows = jnp.stack([
        jnp.concatenate([zH,
                         kp["b2"] if s >= 1 else zH,
                         kp["b3"] if s >= 2 else zH])
        for s in range(T + 2)])                                   # (T+2, 3*hp)
    addend = addend + bias_rows[:, None, :]                       # (T+2, b_pad, 3*hp)

    h3 = pl.pallas_call(
        rnn_wavefront_kernel,
        out_shape=jax.ShapeDtypeStruct((b_pad, hp), jnp.float32),
        grid_spec=pltpu.PrefetchScalarGridSpec(
            num_scalar_prefetch=0,
            grid=(b_pad // bt,),
            in_specs=[
                pl.BlockSpec((T + 2, bt, 3 * hp), lambda b: (0, b, 0)),
                pl.BlockSpec((3 * hp, 3 * hp), lambda b: (0, 0)),
            ],
            out_specs=pl.BlockSpec((bt, hp), lambda b: (b, 0)),
        ),
        compiler_params=pltpu.CompilerParams(
            dimension_semantics=("parallel",)),
    )(addend, kp["wblk"])

    # Tiny final FC (H -> output_size) as one XLA matmul over the whole batch.
    return h3[:B, :H] @ kp["fc_w"].T + kp["fc_b"]


def init_torch_params(key, input_size=2, hidden_size=50, output_size=2):
    """PyTorch-layout params (uniform +/- 1/sqrt(H)), f32."""
    H = hidden_size
    bound = 1.0 / jnp.sqrt(jnp.float32(H))
    ks = jax.random.split(key, 14)

    def u(k, shape):
        return jax.random.uniform(k, shape, jnp.float32, -bound, bound)

    return {
        "w1_ih": u(ks[0], (H, input_size)), "w1_hh": u(ks[1], (H, H)),
        "b1_ih": u(ks[2], (H,)), "b1_hh": u(ks[3], (H,)),
        "w2_ih": u(ks[4], (H, H)), "w2_hh": u(ks[5], (H, H)),
        "b2_ih": u(ks[6], (H,)), "b2_hh": u(ks[7], (H,)),
        "w3_ih": u(ks[8], (H, H)), "w3_hh": u(ks[9], (H, H)),
        "b3_ih": u(ks[10], (H,)), "b3_hh": u(ks[11], (H,)),
        "fc_w": u(ks[12], (output_size, H)), "fc_b": u(ks[13], (output_size,)),
    }


def prepare_kernel_params(p, hp=HP):
    """Right-multiply form, zero-pad H->hp, build the block-banded wavefront
    weight.  Columns of wblk = [h1_new | h2_new | h3_new], rows = the previous
    wavefront state [h1_prev | h2_prev | h3_prev]."""
    H = p["w1_hh"].shape[0]
    I = p["w1_ih"].shape[1]

    def pad2(w, rows, cols):
        return jnp.pad(w, ((0, rows - w.shape[0]), (0, cols - w.shape[1])))

    def padb(b):
        return jnp.pad(b, (0, hp - H))

    w1x = pad2(p["w1_ih"].T, I, hp)                        # (I, hp)
    b1 = padb(p["b1_ih"] + p["b1_hh"])                     # (hp,)
    b2 = padb(p["b2_ih"] + p["b2_hh"])
    b3 = padb(p["b3_ih"] + p["b3_hh"])

    Z = jnp.zeros((hp, hp), jnp.float32)
    w1hh = pad2(p["w1_hh"].T, hp, hp)
    w2ih = pad2(p["w2_ih"].T, hp, hp)
    w2hh = pad2(p["w2_hh"].T, hp, hp)
    w3ih = pad2(p["w3_ih"].T, hp, hp)
    w3hh = pad2(p["w3_hh"].T, hp, hp)
    wblk = jnp.concatenate([
        jnp.concatenate([w1hh, w2ih, Z], axis=1),   # contributions of h1_prev
        jnp.concatenate([Z, w2hh, w3ih], axis=1),   # contributions of h2_prev
        jnp.concatenate([Z, Z, w3hh], axis=1),      # contributions of h3_prev
    ], axis=0)                                             # (3hp, 3hp)

    return {"w1x": w1x, "b1": b1, "b2": b2, "b3": b3, "wblk": wblk,
            "fc_w": p["fc_w"], "fc_b": p["fc_b"]}


def reference_forward(x, p):
    """Pure-JAX f32 reference of the PyTorch forward."""
    B, T, _ = x.shape
    H = p["w1_hh"].shape[0]

    def run_layer(inp, w_ih, w_hh, b_ih, b_hh):
        def step(h, xt):
            h = jnp.tanh(xt @ w_ih.T + b_ih + h @ w_hh.T + b_hh)
            return h, h
        _, outs = lax.scan(step, jnp.zeros((B, H), jnp.float32),
                           jnp.transpose(inp, (1, 0, 2)))
        return jnp.transpose(outs, (1, 0, 2))

    o = run_layer(x, p["w1_ih"], p["w1_hh"], p["b1_ih"], p["b1_hh"])
    o = run_layer(o, p["w2_ih"], p["w2_hh"], p["b2_ih"], p["b2_hh"])
    o = run_layer(o, p["w3_ih"], p["w3_hh"], p["b3_ih"], p["b3_hh"])
    return o[:, -1, :] @ p["fc_w"].T + p["fc_b"]


if __name__ == "__main__":
    B, T, INPUT, HIDDEN, OUTPUT = 2, 8, 2, 50, 2
    key = jax.random.PRNGKey(0)
    kx, kparams = jax.random.split(key)
    x = jax.random.normal(kx, (B, T, INPUT), jnp.float32)

    torch_params = init_torch_params(kparams, INPUT, HIDDEN, OUTPUT)
    kernel_params = prepare_kernel_params(torch_params)

    out = multi_feature_rnn_forward(x, kernel_params)
    out = jax.block_until_ready(out)

    ref = reference_forward(x, torch_params)
    assert out.shape == (B, OUTPUT)
    assert jnp.allclose(out, ref, atol=1e-4, rtol=1e-4), (out, ref)

    print("KERNEL_OK")
</pallas_src>

<mosaic_0001>
module attributes {stable_mosaic.version = 11 : i64} {
  func.func @rnn_wavefront_kernel(%arg0: i32, %arg1: memref<10x8x192xf32, #tpu.memory_space<vmem>>, %arg2: memref<192x192xf32, #tpu.memory_space<vmem>>, %arg3: memref<8x64xf32, #tpu.memory_space<vmem>>) attributes {dimension_semantics = [#tpu.dimension_semantics<parallel>], iteration_bounds = array<i64: 2>, scalar_prefetch = 0 : i64, scratch_operands = 0 : i64, tpu.core_type = #tpu.core_type<tc>, window_params = [{transform_indices = @transform_0, window_bounds = array<i64: 10, 8, 192>}, {pipeline_mode = #tpu.pipeline_mode<synchronous>, transform_indices = @transform_1, window_bounds = array<i64: 192, 192>}, {transform_indices = @transform_2, window_bounds = array<i64: 8, 64>}]} {
    %c0 = arith.constant 0 : index
    %c0_0 = arith.constant 0 : index
    %c0_1 = arith.constant 0 : index
    %0 = vector.load %arg1[%c0, %c0_0, %c0_1] : memref<10x8x192xf32, #tpu.memory_space<vmem>>, vector<1x8x192xf32>
    %1 = vector.shape_cast %0 : vector<1x8x192xf32> to vector<8x192xf32>
    %2 = math.tanh %1 : vector<8x192xf32>
    %c0_2 = arith.constant 0 : index
    %c0_3 = arith.constant 0 : index
    %3 = vector.load %arg2[%c0_2, %c0_3] : memref<192x192xf32, #tpu.memory_space<vmem>>, vector<192x192xf32>
    %cst = arith.constant dense<0.000000e+00> : vector<8x192xf32>
    %4 = tpu.matmul %2, %3, %cst {dimension_numbers = #tpu.dot_dimension_numbers<[1], [0], [0], [1], [0, 0, 1, 1], [], []>} : vector<8x192xf32>, vector<192x192xf32>, vector<8x192xf32> -> vector<8x192xf32>
    %c1 = arith.constant 1 : index
    %c0_4 = arith.constant 0 : index
    %c0_5 = arith.constant 0 : index
    %5 = vector.load %arg1[%c1, %c0_4, %c0_5] : memref<10x8x192xf32, #tpu.memory_space<vmem>>, vector<1x8x192xf32>
    %6 = vector.shape_cast %5 : vector<1x8x192xf32> to vector<8x192xf32>
    %7 = arith.addf %4, %6 : vector<8x192xf32>
    %8 = math.tanh %7 : vector<8x192xf32>
    %c0_6 = arith.constant 0 : index
    %c0_7 = arith.constant 0 : index
    %9 = vector.load %arg2[%c0_6, %c0_7] : memref<192x192xf32, #tpu.memory_space<vmem>>, vector<192x192xf32>
    %cst_8 = arith.constant dense<0.000000e+00> : vector<8x192xf32>
    %10 = tpu.matmul %8, %9, %cst_8 {dimension_numbers = #tpu.dot_dimension_numbers<[1], [0], [0], [1], [0, 0, 1, 1], [], []>} : vector<8x192xf32>, vector<192x192xf32>, vector<8x192xf32> -> vector<8x192xf32>
    %c2 = arith.constant 2 : index
    %c0_9 = arith.constant 0 : index
    %c0_10 = arith.constant 0 : index
    %11 = vector.load %arg1[%c2, %c0_9, %c0_10] : memref<10x8x192xf32, #tpu.memory_space<vmem>>, vector<1x8x192xf32>
    %12 = vector.shape_cast %11 : vector<1x8x192xf32> to vector<8x192xf32>
    %13 = arith.addf %10, %12 : vector<8x192xf32>
    %14 = math.tanh %13 : vector<8x192xf32>
    %c0_11 = arith.constant 0 : index
    %c0_12 = arith.constant 0 : index
    %15 = vector.load %arg2[%c0_11, %c0_12] : memref<192x192xf32, #tpu.memory_space<vmem>>, vector<192x192xf32>
    %cst_13 = arith.constant dense<0.000000e+00> : vector<8x192xf32>
    %16 = tpu.matmul %14, %15, %cst_13 {dimension_numbers = #tpu.dot_dimension_numbers<[1], [0], [0], [1], [0, 0, 1, 1], [], []>} : vector<8x192xf32>, vector<192x192xf32>, vector<8x192xf32> -> vector<8x192xf32>
    %c3 = arith.constant 3 : index
    %c0_14 = arith.constant 0 : index
    %c0_15 = arith.constant 0 : index
    %17 = vector.load %arg1[%c3, %c0_14, %c0_15] : memref<10x8x192xf32, #tpu.memory_space<vmem>>, vector<1x8x192xf32>
    %18 = vector.shape_cast %17 : vector<1x8x192xf32> to vector<8x192xf32>
    %19 = arith.addf %16, %18 : vector<8x192xf32>
    %20 = math.tanh %19 : vector<8x192xf32>
    %c0_16 = arith.constant 0 : index
    %c0_17 = arith.constant 0 : index
    %21 = vector.load %arg2[%c0_16, %c0_17] : memref<192x192xf32, #tpu.memory_space<vmem>>, vector<192x192xf32>
    %cst_18 = arith.constant dense<0.000000e+00> : vector<8x192xf32>
    %22 = tpu.matmul %20, %21, %cst_18 {dimension_numbers = #tpu.dot_dimension_numbers<[1], [0], [0], [1], [0, 0, 1, 1], [], []>} : vector<8x192xf32>, vector<192x192xf32>, vector<8x192xf32> -> vector<8x192xf32>
    %c4 = arith.constant 4 : index
    %c0_19 = arith.constant 0 : index
    %c0_20 = arith.constant 0 : index
    %23 = vector.load %arg1[%c4, %c0_19, %c0_20] : memref<10x8x192xf32, #tpu.memory_space<vmem>>, vector<1x8x192xf32>
    %24 = vector.shape_cast %23 : vector<1x8x192xf32> to vector<8x192xf32>
    %25 = arith.addf %22, %24 : vector<8x192xf32>
    %26 = math.tanh %25 : vector<8x192xf32>
    %c0_21 = arith.constant 0 : index
    %c0_22 = arith.constant 0 : index
    %27 = vector.load %arg2[%c0_21, %c0_22] : memref<192x192xf32, #tpu.memory_space<vmem>>, vector<192x192xf32>
    %cst_23 = arith.constant dense<0.000000e+00> : vector<8x192xf32>
    %28 = tpu.matmul %26, %27, %cst_23 {dimension_numbers = #tpu.dot_dimension_numbers<[1], [0], [0], [1], [0, 0, 1, 1], [], []>} : vector<8x192xf32>, vector<192x192xf32>, vector<8x192xf32> -> vector<8x192xf32>
    %c5 = arith.constant 5 : index
    %c0_24 = arith.constant 0 : index
    %c0_25 = arith.constant 0 : index
    %29 = vector.load %arg1[%c5, %c0_24, %c0_25] : memref<10x8x192xf32, #tpu.memory_space<vmem>>, vector<1x8x192xf32>
    %30 = vector.shape_cast %29 : vector<1x8x192xf32> to vector<8x192xf32>
    %31 = arith.addf %28, %30 : vector<8x192xf32>
    %32 = math.tanh %31 : vector<8x192xf32>
    %c0_26 = arith.constant 0 : index
    %c0_27 = arith.constant 0 : index
    %33 = vector.load %arg2[%c0_26, %c0_27] : memref<192x192xf32, #tpu.memory_space<vmem>>, vector<192x192xf32>
    %cst_28 = arith.constant dense<0.000000e+00> : vector<8x192xf32>
    %34 = tpu.matmul %32, %33, %cst_28 {dimension_numbers = #tpu.dot_dimension_numbers<[1], [0], [0], [1], [0, 0, 1, 1], [], []>} : vector<8x192xf32>, vector<192x192xf32>, vector<8x192xf32> -> vector<8x192xf32>
    %c6 = arith.constant 6 : index
    %c0_29 = arith.constant 0 : index
    %c0_30 = arith.constant 0 : index
    %35 = vector.load %arg1[%c6, %c0_29, %c0_30] : memref<10x8x192xf32, #tpu.memory_space<vmem>>, vector<1x8x192xf32>
    %36 = vector.shape_cast %35 : vector<1x8x192xf32> to vector<8x192xf32>
    %37 = arith.addf %34, %36 : vector<8x192xf32>
    %38 = math.tanh %37 : vector<8x192xf32>
    %c0_31 = arith.constant 0 : index
    %c0_32 = arith.constant 0 : index
    %39 = vector.load %arg2[%c0_31, %c0_32] : memref<192x192xf32, #tpu.memory_space<vmem>>, vector<192x192xf32>
    %cst_33 = arith.constant dense<0.000000e+00> : vector<8x192xf32>
    %40 = tpu.matmul %38, %39, %cst_33 {dimension_numbers = #tpu.dot_dimension_numbers<[1], [0], [0], [1], [0, 0, 1, 1], [], []>} : vector<8x192xf32>, vector<192x192xf32>, vector<8x192xf32> -> vector<8x192xf32>
    %c7 = arith.constant 7 : index
    %c0_34 = arith.constant 0 : index
    %c0_35 = arith.constant 0 : index
    %41 = vector.load %arg1[%c7, %c0_34, %c0_35] : memref<10x8x192xf32, #tpu.memory_space<vmem>>, vector<1x8x192xf32>
    %42 = vector.shape_cast %41 : vector<1x8x192xf32> to vector<8x192xf32>
    %43 = arith.addf %40, %42 : vector<8x192xf32>
    %44 = math.tanh %43 : vector<8x192xf32>
    %c0_36 = arith.constant 0 : index
    %c0_37 = arith.constant 0 : index
    %45 = vector.load %arg2[%c0_36, %c0_37] : memref<192x192xf32, #tpu.memory_space<vmem>>, vector<192x192xf32>
    %cst_38 = arith.constant dense<0.000000e+00> : vector<8x192xf32>
    %46 = tpu.matmul %44, %45, %cst_38 {dimension_numbers = #tpu.dot_dimension_numbers<[1], [0], [0], [1], [0, 0, 1, 1], [], []>} : vector<8x192xf32>, vector<192x192xf32>, vector<8x192xf32> -> vector<8x192xf32>
    %c8 = arith.constant 8 : index
    %c0_39 = arith.constant 0 : index
    %c0_40 = arith.constant 0 : index
    %47 = vector.load %arg1[%c8, %c0_39, %c0_40] : memref<10x8x192xf32, #tpu.memory_space<vmem>>, vector<1x8x192xf32>
    %48 = vector.shape_cast %47 : vector<1x8x192xf32> to vector<8x192xf32>
    %49 = arith.addf %46, %48 : vector<8x192xf32>
    %50 = math.tanh %49 : vector<8x192xf32>
    %c0_41 = arith.constant 0 : index
    %c0_42 = arith.constant 0 : index
    %51 = vector.load %arg2[%c0_41, %c0_42] : memref<192x192xf32, #tpu.memory_space<vmem>>, vector<192x192xf32>
    %cst_43 = arith.constant dense<0.000000e+00> : vector<8x192xf32>
    %52 = tpu.matmul %50, %51, %cst_43 {dimension_numbers = #tpu.dot_dimension_numbers<[1], [0], [0], [1], [0, 0, 1, 1], [], []>} : vector<8x192xf32>, vector<192x192xf32>, vector<8x192xf32> -> vector<8x192xf32>
    %c9 = arith.constant 9 : index
    %c0_44 = arith.constant 0 : index
    %c0_45 = arith.constant 0 : index
    %53 = vector.load %arg1[%c9, %c0_44, %c0_45] : memref<10x8x192xf32, #tpu.memory_space<vmem>>, vector<1x8x192xf32>
    %54 = vector.shape_cast %53 : vector<1x8x192xf32> to vector<8x192xf32>
    %55 = arith.addf %52, %54 : vector<8x192xf32>
    %56 = math.tanh %55 : vector<8x192xf32>
    %57 = vector.extract_strided_slice %56 {offsets = [0, 128], sizes = [8, 64], strides = [1, 1]} : vector<8x192xf32> to vector<8x64xf32>
    %c0_46 = arith.constant 0 : index
    %c0_47 = arith.constant 0 : index
    %58 = vector.load %arg3[%c0_46, %c0_47] : memref<8x64xf32, #tpu.memory_space<vmem>>, vector<8x64xf32>
    tpu.vector_store %arg3[%c0_46, %c0_47], %57 {strides = array<i32>} : memref<8x64xf32, #tpu.memory_space<vmem>>, vector<8x64xf32>,
    return
  }
  func.func @transform_0(%arg0: i32) -> (i32, i32, i32) {
    %c0_i32 = arith.constant 0 : i32
    %c0_i32_0 = arith.constant 0 : i32
    %c0_i32_1 = arith.constant 0 : i32
    return %c0_i32, %arg0, %c0_i32_0 : i32, i32, i32
  }
  func.func @transform_1(%arg0: i32) -> (i32, i32) {
    %c0_i32 = arith.constant 0 : i32
    %c0_i32_0 = arith.constant 0 : i32
    %c0_i32_1 = arith.constant 0 : i32
    return %c0_i32, %c0_i32_0 : i32, i32
  }
  func.func @transform_2(%arg0: i32) -> (i32, i32) {
    %c0_i32 = arith.constant 0 : i32
    %c0_i32_0 = arith.constant 0 : i32
    return %arg0, %c0_i32 : i32, i32
  }
}

</mosaic_0001>

<llo_original>
// kernel: tpu_custom_call.1
$region0: #{tpu_custom_call.1}
  #allocation0 [shape = 'u32[]', space=smem, size = 0x4, offset = 0x4, fixed_abs, tag = 'smem constant byte address 0x4 - core index']
  #allocation1 [shape = 'u32[144,128]{1,0:T(1,128)}', space=vmem, size = 0x12000, scoped, tag = 'internal scratch']
  %s0 = inlined_call_operand.hbm [shape: f32[10,16,192], index: 0, kind: input, shape index: {}]
  %s1 = inlined_call_operand.hbm [shape: f32[192,192], index: 1, kind: input, shape index: {}]
  %s2 = inlined_call_operand.hbm [shape: f32[16,64], index: 2, kind: output, shape index: {}]
  %s3 = sld [smem:[#allocation0]]
  $region49: #{tpu_custom_call.1} parent=0
    _
  %s5 = ssub.s32 1, %s3
  %s6 = scalar_select 0, %s5, %s3
  $region1: #{tpu_custom_call.1} parent=0
    #allocation2 [shape = 'u8[163840]{0}', space=vmem, size = 0x28000, scoped, tag = 'input window, operand 0']
    #allocation3 [shape = 's32[2]{0}', space=sflag, size = 0x8, scoped, tag = 'scoped memory for tpu_custom_call.1']
    #allocation4 [shape = 's32[2]{0}', space=sflag, size = 0x8, scoped, tag = 'scoped memory for tpu_custom_call.1']
    #allocation5 [shape = 'u8[196608]{0}', space=vmem, size = 0x30000, scoped, tag = 'input window, operand 1, single buffered']
    #allocation6 [shape = 's32[1]{0}', space=sflag, size = 0x4, scoped, tag = 'scoped memory for tpu_custom_call.1']
    #allocation7 [shape = 'u8[8192]{0}', space=vmem, size = 0x2000, scoped, tag = 'output window, operand 0']
    %7 = vsyncpa [#allocation3], 0
    %s8 = scalar_lea.sflag [#allocation3], 1
    %9 = vsyncpa %s8, 0
    %10 = vsyncpa [#allocation6], 0
    %11 = vsyncpa [#allocation4], 0
    %s12 = scalar_lea.sflag [#allocation4], 1
    %13 = vsyncpa %s12, 0
    loop: start=0, step=1, limit=4
    $region2: #{tpu_custom_call.1} parent=1 // loop_pre_header
      _
    $region3: #{tpu_custom_call.1} parent=1 // loop_header
      %s15 = sphi 0, %s19
      %p16 = scmp.ge.s32.totalorder %s15, 4
      %s25 = sphi 0, %s27
      %s28 = sphi 0, %s25
      %s29 = sphi 0, %s28
      %s45 = sphi 0, %s29
      %s49 = sphi 0, %s49
      %s51 = sphi 0, %s49
      %s52 = sphi 0, %s51
      %s66 = sphi 0, %s52
      %s72 = sphi 0, %s74
      %s75 = sphi 0, %s72
      %s76 = sphi 0, %s75
      %s92 = sphi 0, %s76
    $region4: #{tpu_custom_call.1} parent=1 // loop_header_branch
      %18 = sbr.rel (%p16) target = $region8
    $region5: #{tpu_custom_call.1} parent=1 // loop_body
      %s20 = ssub.s32 %s15, 1
      %s21 = ssub.s32 %s15, 2
      %s22 = sadd.s32 %s15, 1
      %s23 = ssub.s32 %s15, %s22
      %p24 = scmp.eq.s32.totalorder %s23, 0
      %s26 = sadd.s32 %s25, 1
      %s27 = scalar_select %p24, %s25, %s26
      %p30 = pneg %p24
      %p31 = scmp.eq.s32.totalorder %s15, 1
      %p32 = por %p30, %p31
      %p33 = scmp.ne.s32.totalorder %s25, %s28
      %p34 = scmp.eq.s32.totalorder %s15, 0
      %p35 = por %p33, %p34
      %p36 = scmp.ne.s32.totalorder %s25, %s28
      %p37 = scmp.eq.s32.totalorder %s20, 1
      %p38 = por %p36, %p37
      %p39 = scmp.ne.s32.totalorder %s28, %s29
      %p40 = scmp.eq.s32.totalorder %s20, 0
      %p41 = por %p39, %p40
      %p42 = scmp.ne.s32.totalorder %s28, %s29
      %p43 = scmp.eq.s32.totalorder %s21, 1
      %p44 = por %p42, %p43
      %p46 = scmp.ne.s32.totalorder %s29, %s45
      %p47 = scmp.eq.s32.totalorder %s21, 0
      %p48 = por %p46, %p47
      %s50 = sadd.s32 %s49, 1
      %p53 = scmp.eq.s32.totalorder %s15, 1
      %p54 = scmp.ne.s32.totalorder %s49, %s51
      %p55 = scmp.eq.s32.totalorder %s15, 0
      %p56 = por %p54, %p55
      %p57 = scmp.ne.s32.totalorder %s49, %s51
      %p58 = scmp.eq.s32.totalorder %s20, 1
      %p59 = por %p57, %p58
      %p60 = scmp.ne.s32.totalorder %s51, %s52
      %p61 = scmp.eq.s32.totalorder %s20, 0
      %p62 = por %p60, %p61
      %p63 = scmp.ne.s32.totalorder %s51, %s52
      %p64 = scmp.eq.s32.totalorder %s21, 1
      %p65 = por %p63, %p64
      %p67 = scmp.ne.s32.totalorder %s52, %s66
      %p68 = scmp.eq.s32.totalorder %s21, 0
      %p69 = por %p67, %p68
      %s70 = ssub.s32 %s15, %s22
      %p71 = scmp.eq.s32.totalorder %s70, 0
      %s73 = sadd.s32 %s72, 1
      %s74 = scalar_select %p71, %s72, %s73
      %p77 = pneg %p71
      %p78 = scmp.eq.s32.totalorder %s15, 1
      %p79 = por %p77, %p78
      %p80 = scmp.ne.s32.totalorder %s72, %s75
      %p81 = scmp.eq.s32.totalorder %s15, 0
      %p82 = por %p80, %p81
      %p83 = scmp.ne.s32.totalorder %s72, %s75
      %p84 = scmp.eq.s32.totalorder %s20, 1
      %p85 = por %p83, %p84
      %p86 = scmp.ne.s32.totalorder %s75, %s76
      %p87 = scmp.eq.s32.totalorder %s20, 0
      %p88 = por %p86, %p87
      %p89 = scmp.ne.s32.totalorder %s75, %s76
      %p90 = scmp.eq.s32.totalorder %s21, 1
      %p91 = por %p89, %p90
      %p93 = scmp.ne.s32.totalorder %s76, %s92
      %p94 = scmp.eq.s32.totalorder %s21, 0
      %p95 = por %p93, %p94
      %p96 = scmp.le.s32.totalorder 1, %s15
      %p97 = scmp.lt.s32.totalorder %s15, 3
      %p98 = pnand %p96, %p97
      %p99 = pneg %p98
      // Predicated region
      $region9: #{tpu_custom_call.1} parent=5 // pred_check
        _
      $region10: #{tpu_custom_call.1} parent=5 // pred_check_branch
        %101 = sbr.rel (%p98) target = $region12
      $region11: #{tpu_custom_call.1} parent=5 // pred_region
        %s102 = ssub.s32 %s15, 1
        // Predicated region
        $region13: #{tpu_custom_call.1} parent=11 // pred_check
          %p103 = pneg %p62
        $region14: #{tpu_custom_call.1} parent=11 // pred_check_branch
          %105 = sbr.rel (%p103) target = $region16
        $region15: #{tpu_custom_call.1} parent=11 // pred_region
          %s107 = ssub.s32 6144, 6144
          %108 = vsyncadd [#allocation6], %s107
          %s109 = sshll.u32 [#allocation5], 4
          %s110 = int_to_ptr.vmem [resolvable:$true] %s109
          %115 = dma.hbm_to_vmem [thread:$0]  %s1, 6144, %s110, [#allocation6], 256, 256, 16
        $region16: #{tpu_custom_call.1} parent=11 // pred_fallthru
          _
      $region12: #{tpu_custom_call.1} parent=5 // pred_fallthru
        _
      %p116 = scmp.lt.s32.totalorder %s15, 2
      // Predicated region
      $region17: #{tpu_custom_call.1} parent=5 // pred_check
        %p117 = pneg %p116
      $region18: #{tpu_custom_call.1} parent=5 // pred_check_branch
        %119 = sbr.rel (%p117) target = $region20
      $region19: #{tpu_custom_call.1} parent=5 // pred_region
        // Predicated region
        $region21: #{tpu_custom_call.1} parent=19 // pred_check
          %p120 = pneg %p35
        $region22: #{tpu_custom_call.1} parent=19 // pred_check_branch
          %122 = sbr.rel (%p120) target = $region24
        $region23: #{tpu_custom_call.1} parent=19 // pred_region
          %s123 = sand.u32 %s25, 1
          %s124 = scalar_lea.sflag [#allocation3], %s123
          %s125 = sand.u32 %s25, 1
          %s126 = smul.addr %s125, 160
          %s127 = scalar_lea.vmem [#allocation2], %s126
          %s129 = ssub.s32 2560, 2560
          %130 = vsyncadd %s124, %s129
          %s131 = smul.addr %s15, 2
          %s132 = smul.addr %s131, 128
          %s133 = scalar_lea.hbm %s0, %s132
          %s134 = sshll.u32 %s127, 4
          %s135 = int_to_ptr.vmem [resolvable:$true] %s134
          %140 = dma.hbm_to_vmem [thread:$0]  %s133, 2560, %s135, %s124, 512, 256, 16
        $region24: #{tpu_custom_call.1} parent=19 // pred_fallthru
          _
      $region20: #{tpu_custom_call.1} parent=5 // pred_fallthru
        _
      %p141 = scmp.le.s32.totalorder 1, %s15
      %p142 = scmp.lt.s32.totalorder %s15, 3
      %p143 = pnand %p141, %p142
      %p144 = pneg %p143
      // Predicated region
      $region25: #{tpu_custom_call.1} parent=5 // pred_check
        _
      $region26: #{tpu_custom_call.1} parent=5 // pred_check_branch
        %146 = sbr.rel (%p143) target = $region28
      $region27: #{tpu_custom_call.1} parent=5 // pred_region
        %s147 = ssub.s32 %s15, 1
        %s148 = sand.u32 %s28, 1
        %s149 = scalar_lea.sflag [#allocation3], %s148
        %s150 = sand.u32 %s28, 1
        %s151 = smul.addr %s150, 160
        %s152 = scalar_lea.vmem [#allocation2], %s151
        // Predicated region
        $region29: #{tpu_custom_call.1} parent=27 // pred_check
          %p153 = pneg %p41
        $region30: #{tpu_custom_call.1} parent=27 // pred_check_branch
          %155 = sbr.rel (%p153) target = $region32
        $region31: #{tpu_custom_call.1} parent=27 // pred_region
          %156 = dma.done %s149, 2560
        $region32: #{tpu_custom_call.1} parent=27 // pred_fallthru
          _
        // Predicated region
        $region33: #{tpu_custom_call.1} parent=27 // pred_check
          %p157 = pneg %p62
        $region34: #{tpu_custom_call.1} parent=27 // pred_check_branch
          %159 = sbr.rel (%p157) target = $region36
        $region35: #{tpu_custom_call.1} parent=27 // pred_region
          %160 = dma.done [#allocation6], 6144
        $region36: #{tpu_custom_call.1} parent=27 // pred_fallthru
          _
        %s161 = sand.u32 %s28, 1
        %s162 = scalar_lea.sflag [#allocation3], %s161
        %s163 = sand.u32 %s28, 1
        %s164 = smul.addr %s163, 160
        %s165 = scalar_lea.vmem [#allocation2], %s164
        %p166 = pneg %p41
        %p167 = pneg %p38
        %p168 = pneg %p62
        %p169 = pneg %p59
        %p170 = pneg %p88
        %p171 = pneg %p85
        %s172 = sand.u32 %s75, 1
        %s173 = scalar_lea.sflag [#allocation4], %s172
        %s174 = sand.u32 %s75, 1
        %s175 = smul.addr %s174, 8
        %s176 = scalar_lea.vmem [#allocation7], %s175
        %v177 = vld [vmem:[%s152] sm:$0xff]
        %v178 = vld [vmem:[%s152 + $0x8] sm:$0xff]
        %v179 = vtanh.pop %v177
        %v180 = vtanh.pop %v178
        %v181 = vld [vmem:[#allocation5] sm:$0xff]
        %v182 = vld [vmem:[#allocation5 + $0x8] sm:$0xff]
        %v183 = vld [vmem:[#allocation5 + $0x10] sm:$0xff]
        %v184 = vld [vmem:[#allocation5 + $0x18] sm:$0xff]
        %v185 = vld [vmem:[#allocation5 + $0x20] sm:$0xff]
        %v186 = vld [vmem:[#allocation5 + $0x28] sm:$0xff]
        %v187 = vld [vmem:[#allocation5 + $0x30] sm:$0xff]
        %v188 = vld [vmem:[#allocation5 + $0x38] sm:$0xff]
        %v189 = vld [vmem:[#allocation5 + $0x40] sm:$0xff]
        %v190 = vld [vmem:[#allocation5 + $0x48] sm:$0xff]
        %v191 = vld [vmem:[#allocation5 + $0x50] sm:$0xff]
        %v192 = vld [vmem:[#allocation5 + $0x58] sm:$0xff]
        %v193 = vld [vmem:[#allocation5 + $0x60] sm:$0xff]
        %v194 = vld [vmem:[#allocation5 + $0x68] sm:$0xff]
        %v195 = vld [vmem:[#allocation5 + $0x70] sm:$0xff]
        %v196 = vld [vmem:[#allocation5 + $0x78] sm:$0xff]
        %v197 = vld [vmem:[#allocation5 + $0x80] sm:$0xff]
        %v198 = vld [vmem:[#allocation5 + $0x88] sm:$0xff]
        %v199 = vld [vmem:[#allocation5 + $0x90] sm:$0xff]
        %v200 = vld [vmem:[#allocation5 + $0x98] sm:$0xff]
        %v201 = vld [vmem:[#allocation5 + $0xa0] sm:$0xff]
        %v202 = vld [vmem:[#allocation5 + $0xa8] sm:$0xff]
        %v203 = vld [vmem:[#allocation5 + $0xb0] sm:$0xff]
        %v204 = vld [vmem:[#allocation5 + $0xb8] sm:$0xff]
        %v205 = vld [vmem:[#allocation5 + $0xc0] sm:$0xff]
        %v206 = vld [vmem:[#allocation5 + $0xc8] sm:$0xff]
        %v207 = vld [vmem:[#allocation5 + $0xd0] sm:$0xff]
        %v208 = vld [vmem:[#allocation5 + $0xd8] sm:$0xff]
        %v209 = vld [vmem:[#allocation5 + $0xe0] sm:$0xff]
        %v210 = vld [vmem:[#allocation5 + $0xe8] sm:$0xff]
        %v211 = vld [vmem:[#allocation5 + $0xf0] sm:$0xff]
        %v212 = vld [vmem:[#allocation5 + $0xf8] sm:$0xff]
        %v213 = vld [vmem:[#allocation5 + $0x100] sm:$0xff]
        %v214 = vld [vmem:[#allocation5 + $0x108] sm:$0xff]
        %v215 = vld [vmem:[#allocation5 + $0x110] sm:$0xff]
        %v216 = vld [vmem:[#allocation5 + $0x118] sm:$0xff]
        %v217 = vld [vmem:[#allocation5 + $0x120] sm:$0xff]
        %v218 = vld [vmem:[#allocation5 + $0x128] sm:$0xff]
        %v219 = vld [vmem:[#allocation5 + $0x130] sm:$0xff]
        %v220 = vld [vmem:[#allocation5 + $0x138] sm:$0xff]
        %v221 = vld [vmem:[#allocation5 + $0x140] sm:$0xff]
        %v222 = vld [vmem:[#allocation5 + $0x148] sm:$0xff]
        %v223 = vld [vmem:[#allocation5 + $0x150] sm:$0xff]
        %v224 = vld [vmem:[#allocation5 + $0x158] sm:$0xff]
        %v225 = vld [vmem:[#allocation5 + $0x160] sm:$0xff]
        %v226 = vld [vmem:[#allocation5 + $0x168] sm:$0xff]
        %v227 = vld [vmem:[#allocation5 + $0x170] sm:$0xff]
        %v228 = vld [vmem:[#allocation5 + $0x178] sm:$0xff]
        %s229 = scalar_lea.vmem %s152, 16 [#allocation2]
        %v230 = vld [vmem:[%s229] sm:$0xff]
        %v231 = vld [vmem:[%s229 + $0x8] sm:$0xff]
        %vm232 = vcmask 523264
        %v234 = vsel %vm232, %v180, 0
        %236 = vmatprep.subr.mxu0 %v212
        %237 = vmatpush1.msra.mxu0 %v211
        %238 = vmatprep.subr.mxu0 %v210
        %239 = vmatpush1.msra.mxu0 %v209
        %240 = vmatprep.subr.mxu0 %v208
        %241 = vmatpush1.msra.mxu0 %v207
        %242 = vmatprep.subr.mxu0 %v206
        %243 = vmatpush1.msra.mxu0 %v205
        %244 = vmatprep.subr.mxu0 %v204
        %245 = vmatpush1.msra.mxu0 %v203
        %246 = vmatprep.subr.mxu0 %v202
        %247 = vmatpush1.msra.mxu0 %v201
        %248 = vmatprep.subr.mxu0 %v200
        %249 = vmatpush1.msra.mxu0 %v199
        %250 = vmatprep.subr.mxu0 %v198
        %251 = vmatpush1.msra.mxu0 %v197
        %252 = vmatprep.subr.mxu0 %v196
        %253 = vmatpush1.msra.mxu0 %v195
        %254 = vmatprep.subr.mxu0 %v194
        %255 = vmatpush1.msra.mxu0 %v193
        %256 = vmatprep.subr.mxu0 %v192
        %257 = vmatpush1.msra.mxu0 %v191
        %258 = vmatprep.subr.mxu0 %v190
        %259 = vmatpush1.msra.mxu0 %v189
        %260 = vmatprep.subr.mxu0 %v188
        %261 = vmatpush1.msra.mxu0 %v187
        %262 = vmatprep.subr.mxu0 %v186
        %263 = vmatpush1.msra.mxu0 %v185
        %264 = vmatprep.subr.mxu0 %v184
        %265 = vmatpush1.msra.mxu0 %v183
        %266 = vmatprep.subr.mxu0 %v182
        %267 = vmatpush1.msra.mxu0 %v181
        %268 = vmatprep.subr.mxu0 0.0
        %269 = vmatpush2.msra.mxu0 0.0
        %270 = vmatprep.subr.mxu0 0.0
        %271 = vmatpush2.msra.mxu0 0.0
        %272 = vmatprep.subr.mxu0 0.0
        %273 = vmatpush2.msra.mxu0 0.0
        %274 = vmatprep.subr.mxu0 0.0
        %275 = vmatpush2.msra.mxu0 0.0
        %276 = vmatprep.subr.mxu0 0.0
        %277 = vmatpush2.msra.mxu0 0.0
        %278 = vmatprep.subr.mxu0 0.0
        %279 = vmatpush2.msra.mxu0 0.0
        %280 = vmatprep.subr.mxu0 0.0
        %281 = vmatpush2.msra.mxu0 0.0
        %282 = vmatprep.subr.mxu0 0.0
        %283 = vmatpush2.msra.mxu0 0.0
        %284 = vmatprep.subr.mxu0 %v228
        %285 = vmatpush2.msra.mxu0 %v227
        %286 = vmatprep.subr.mxu0 %v226
        %287 = vmatpush2.msra.mxu0 %v225
        %288 = vmatprep.subr.mxu0 %v224
        %289 = vmatpush2.msra.mxu0 %v223
        %290 = vmatprep.subr.mxu0 %v222
        %291 = vmatpush2.msra.mxu0 %v221
        %292 = vmatprep.subr.mxu0 %v220
        %293 = vmatpush2.msra.mxu0 %v219
        %294 = vmatprep.subr.mxu0 %v218
        %295 = vmatpush2.msra.mxu0 %v217
        %296 = vmatprep.subr.mxu0 %v216
        %297 = vmatpush2.msra.mxu0 %v215
        %298 = vmatprep.subr.mxu0 %v214
        %299 = vmatpush2.msra.mxu0 %v213
        %300 = vmatprep.mubr.f32.mxu0 %v234
        %301 = vmatmul.mubr.f32.gmra.mxu0 %v179
        %v302 = vpop.f32.mrf.mxu0
        %v303 = vadd.f32 %v230, %v302
        %v304 = vpop.f32.mrf.mxu0
        %v305 = vadd.f32 %v231, %v304
        %306 = vdwg.mxu0
        %v307 = vtanh.pop %v303
        %v308 = vtanh.pop %v305
        %s309 = scalar_lea.vmem %s152, 32 [#allocation2]
        %v310 = vld [vmem:[%s309] sm:$0xff]
        %v311 = vld [vmem:[%s309 + $0x8] sm:$0xff]
        %v313 = vsel %vm232, %v308, 0
        %315 = vmatprep.subr.mxu0 %v212
        %316 = vmatpush1.msra.mxu0 %v211
        %317 = vmatprep.subr.mxu0 %v210
        %318 = vmatpush1.msra.mxu0 %v209
        %319 = vmatprep.subr.mxu0 %v208
        %320 = vmatpush1.msra.mxu0 %v207
        %321 = vmatprep.subr.mxu0 %v206
        %322 = vmatpush1.msra.mxu0 %v205
        %323 = vmatprep.subr.mxu0 %v204
        %324 = vmatpush1.msra.mxu0 %v203
        %325 = vmatprep.subr.mxu0 %v202
        %326 = vmatpush1.msra.mxu0 %v201
        %327 = vmatprep.subr.mxu0 %v200
        %328 = vmatpush1.msra.mxu0 %v199
        %329 = vmatprep.subr.mxu0 %v198
        %330 = vmatpush1.msra.mxu0 %v197
        %331 = vmatprep.subr.mxu0 %v196
        %332 = vmatpush1.msra.mxu0 %v195
        %333 = vmatprep.subr.mxu0 %v194
        %334 = vmatpush1.msra.mxu0 %v193
        %335 = vmatprep.subr.mxu0 %v192
        %336 = vmatpush1.msra.mxu0 %v191
        %337 = vmatprep.subr.mxu0 %v190
        %338 = vmatpush1.msra.mxu0 %v189
        %339 = vmatprep.subr.mxu0 %v188
        %340 = vmatpush1.msra.mxu0 %v187
        %341 = vmatprep.subr.mxu0 %v186
        %342 = vmatpush1.msra.mxu0 %v185
        %343 = vmatprep.subr.mxu0 %v184
        %344 = vmatpush1.msra.mxu0 %v183
        %345 = vmatprep.subr.mxu0 %v182
        %346 = vmatpush1.msra.mxu0 %v181
        %347 = vmatprep.subr.mxu0 0.0
        %348 = vmatpush2.msra.mxu0 0.0
        %349 = vmatprep.subr.mxu0 0.0
        %350 = vmatpush2.msra.mxu0 0.0
        %351 = vmatprep.subr.mxu0 0.0
        %352 = vmatpush2.msra.mxu0 0.0
        %353 = vmatprep.subr.mxu0 0.0
        %354 = vmatpush2.msra.mxu0 0.0
        %355 = vmatprep.subr.mxu0 0.0
        %356 = vmatpush2.msra.mxu0 0.0
        %357 = vmatprep.subr.mxu0 0.0
        %358 = vmatpush2.msra.mxu0 0.0
        %359 = vmatprep.subr.mxu0 0.0
        %360 = vmatpush2.msra.mxu0 0.0
        %361 = vmatprep.subr.mxu0 0.0
        %362 = vmatpush2.msra.mxu0 0.0
        %363 = vmatprep.subr.mxu0 %v228
        %364 = vmatpush2.msra.mxu0 %v227
        %365 = vmatprep.subr.mxu0 %v226
        %366 = vmatpush2.msra.mxu0 %v225
        %367 = vmatprep.subr.mxu0 %v224
        %368 = vmatpush2.msra.mxu0 %v223
        %369 = vmatprep.subr.mxu0 %v222
        %370 = vmatpush2.msra.mxu0 %v221
        %371 = vmatprep.subr.mxu0 %v220
        %372 = vmatpush2.msra.mxu0 %v219
        %373 = vmatprep.subr.mxu0 %v218
        %374 = vmatpush2.msra.mxu0 %v217
        %375 = vmatprep.subr.mxu0 %v216
        %376 = vmatpush2.msra.mxu0 %v215
        %377 = vmatprep.subr.mxu0 %v214
        %378 = vmatpush2.msra.mxu0 %v213
        %379 = vmatprep.mubr.f32.mxu0 %v313
        %380 = vmatmul.mubr.f32.gmra.mxu0 %v307
        %v381 = vpop.f32.mrf.mxu0
        %v382 = vadd.f32 %v310, %v381
        %v383 = vpop.f32.mrf.mxu0
        %v384 = vadd.f32 %v311, %v383
        %385 = vdwg.mxu0
        %v386 = vtanh.pop %v382
        %v387 = vtanh.pop %v384
        %s388 = scalar_lea.vmem %s152, 48 [#allocation2]
        %v389 = vld [vmem:[%s388] sm:$0xff]
        %v390 = vld [vmem:[%s388 + $0x8] sm:$0xff]
        %v392 = vsel %vm232, %v387, 0
        %394 = vmatprep.subr.mxu0 %v212
        %395 = vmatpush1.msra.mxu0 %v211
        %396 = vmatprep.subr.mxu0 %v210
        %397 = vmatpush1.msra.mxu0 %v209
        %398 = vmatprep.subr.mxu0 %v208
        %399 = vmatpush1.msra.mxu0 %v207
        %400 = vmatprep.subr.mxu0 %v206
        %401 = vmatpush1.msra.mxu0 %v205
        %402 = vmatprep.subr.mxu0 %v204
        %403 = vmatpush1.msra.mxu0 %v203
        %404 = vmatprep.subr.mxu0 %v202
        %405 = vmatpush1.msra.mxu0 %v201
        %406 = vmatprep.subr.mxu0 %v200
        %407 = vmatpush1.msra.mxu0 %v199
        %408 = vmatprep.subr.mxu0 %v198
        %409 = vmatpush1.msra.mxu0 %v197
        %410 = vmatprep.subr.mxu0 %v196
        %411 = vmatpush1.msra.mxu0 %v195
        %412 = vmatprep.subr.mxu0 %v194
        %413 = vmatpush1.msra.mxu0 %v193
        %414 = vmatprep.subr.mxu0 %v192
        %415 = vmatpush1.msra.mxu0 %v191
        %416 = vmatprep.subr.mxu0 %v190
        %417 = vmatpush1.msra.mxu0 %v189
        %418 = vmatprep.subr.mxu0 %v188
        %419 = vmatpush1.msra.mxu0 %v187
        %420 = vmatprep.subr.mxu0 %v186
        %421 = vmatpush1.msra.mxu0 %v185
        %422 = vmatprep.subr.mxu0 %v184
        %423 = vmatpush1.msra.mxu0 %v183
        %424 = vmatprep.subr.mxu0 %v182
        %425 = vmatpush1.msra.mxu0 %v181
        %426 = vmatprep.subr.mxu0 0.0
        %427 = vmatpush2.msra.mxu0 0.0
        %428 = vmatprep.subr.mxu0 0.0
        %429 = vmatpush2.msra.mxu0 0.0
        %430 = vmatprep.subr.mxu0 0.0
        %431 = vmatpush2.msra.mxu0 0.0
        %432 = vmatprep.subr.mxu0 0.0
        %433 = vmatpush2.msra.mxu0 0.0
        %434 = vmatprep.subr.mxu0 0.0
        %435 = vmatpush2.msra.mxu0 0.0
        %436 = vmatprep.subr.mxu0 0.0
        %437 = vmatpush2.msra.mxu0 0.0
        %438 = vmatprep.subr.mxu0 0.0
        %439 = vmatpush2.msra.mxu0 0.0
        %440 = vmatprep.subr.mxu0 0.0
        %441 = vmatpush2.msra.mxu0 0.0
        %442 = vmatprep.subr.mxu0 %v228
        %443 = vmatpush2.msra.mxu0 %v227
        %444 = vmatprep.subr.mxu0 %v226
        %445 = vmatpush2.msra.mxu0 %v225
        %446 = vmatprep.subr.mxu0 %v224
        %447 = vmatpush2.msra.mxu0 %v223
        %448 = vmatprep.subr.mxu0 %v222
        %449 = vmatpush2.msra.mxu0 %v221
        %450 = vmatprep.subr.mxu0 %v220
        %451 = vmatpush2.msra.mxu0 %v219
        %452 = vmatprep.subr.mxu0 %v218
        %453 = vmatpush2.msra.mxu0 %v217
        %454 = vmatprep.subr.mxu0 %v216
        %455 = vmatpush2.msra.mxu0 %v215
        %456 = vmatprep.subr.mxu0 %v214
        %457 = vmatpush2.msra.mxu0 %v213
        %458 = vmatprep.mubr.f32.mxu0 %v392
        %459 = vmatmul.mubr.f32.gmra.mxu0 %v386
        %v460 = vpop.f32.mrf.mxu0
        %v461 = vadd.f32 %v389, %v460
        %v462 = vpop.f32.mrf.mxu0
        %v463 = vadd.f32 %v390, %v462
        %464 = vdwg.mxu0
        %v465 = vtanh.pop %v461
        %v466 = vtanh.pop %v463
        %s467 = scalar_lea.vmem %s152, 64 [#allocation2]
        %v468 = vld [vmem:[%s467] sm:$0xff]
        %v469 = vld [vmem:[%s467 + $0x8] sm:$0xff]
        %v471 = vsel %vm232, %v466, 0
        %473 = vmatprep.subr.mxu0 %v212
        %474 = vmatpush1.msra.mxu0 %v211
        %475 = vmatprep.subr.mxu0 %v210
        %476 = vmatpush1.msra.mxu0 %v209
        %477 = vmatprep.subr.mxu0 %v208
        %478 = vmatpush1.msra.mxu0 %v207
        %479 = vmatprep.subr.mxu0 %v206
        %480 = vmatpush1.msra.mxu0 %v205
        %481 = vmatprep.subr.mxu0 %v204
        %482 = vmatpush1.msra.mxu0 %v203
        %483 = vmatprep.subr.mxu0 %v202
        %484 = vmatpush1.msra.mxu0 %v201
        %485 = vmatprep.subr.mxu0 %v200
        %486 = vmatpush1.msra.mxu0 %v199
        %487 = vmatprep.subr.mxu0 %v198
        %488 = vmatpush1.msra.mxu0 %v197
        %489 = vmatprep.subr.mxu0 %v196
        %490 = vmatpush1.msra.mxu0 %v195
        %491 = vmatprep.subr.mxu0 %v194
        %492 = vmatpush1.msra.mxu0 %v193
        %493 = vmatprep.subr.mxu0 %v192
        %494 = vmatpush1.msra.mxu0 %v191
        %495 = vmatprep.subr.mxu0 %v190
        %496 = vmatpush1.msra.mxu0 %v189
        %497 = vmatprep.subr.mxu0 %v188
        %498 = vmatpush1.msra.mxu0 %v187
        %499 = vmatprep.subr.mxu0 %v186
        %500 = vmatpush1.msra.mxu0 %v185
        %501 = vmatprep.subr.mxu0 %v184
        %502 = vmatpush1.msra.mxu0 %v183
        %503 = vmatprep.subr.mxu0 %v182
        %504 = vmatpush1.msra.mxu0 %v181
        %505 = vmatprep.subr.mxu0 0.0
        %506 = vmatpush2.msra.mxu0 0.0
        %507 = vmatprep.subr.mxu0 0.0
        %508 = vmatpush2.msra.mxu0 0.0
        %509 = vmatprep.subr.mxu0 0.0
        %510 = vmatpush2.msra.mxu0 0.0
        %511 = vmatprep.subr.mxu0 0.0
        %512 = vmatpush2.msra.mxu0 0.0
        %513 = vmatprep.subr.mxu0 0.0
        %514 = vmatpush2.msra.mxu0 0.0
        %515 = vmatprep.subr.mxu0 0.0
        %516 = vmatpush2.msra.mxu0 0.0
        %517 = vmatprep.subr.mxu0 0.0
        %518 = vmatpush2.msra.mxu0 0.0
        %519 = vmatprep.subr.mxu0 0.0
        %520 = vmatpush2.msra.mxu0 0.0
        %521 = vmatprep.subr.mxu0 %v228
        %522 = vmatpush2.msra.mxu0 %v227
        %523 = vmatprep.subr.mxu0 %v226
        %524 = vmatpush2.msra.mxu0 %v225
        %525 = vmatprep.subr.mxu0 %v224
        %526 = vmatpush2.msra.mxu0 %v223
        %527 = vmatprep.subr.mxu0 %v222
        %528 = vmatpush2.msra.mxu0 %v221
        %529 = vmatprep.subr.mxu0 %v220
        %530 = vmatpush2.msra.mxu0 %v219
        %531 = vmatprep.subr.mxu0 %v218
        %532 = vmatpush2.msra.mxu0 %v217
        %533 = vmatprep.subr.mxu0 %v216
        %534 = vmatpush2.msra.mxu0 %v215
        %535 = vmatprep.subr.mxu0 %v214
        %536 = vmatpush2.msra.mxu0 %v213
        %537 = vmatprep.mubr.f32.mxu0 %v471
        %538 = vmatmul.mubr.f32.gmra.mxu0 %v465
        %v539 = vpop.f32.mrf.mxu0
        %v540 = vadd.f32 %v468, %v539
        %v541 = vpop.f32.mrf.mxu0
        %v542 = vadd.f32 %v469, %v541
        %543 = vdwg.mxu0
        %v544 = vtanh.pop %v540
        %v545 = vtanh.pop %v542
        %s546 = scalar_lea.vmem %s152, 80 [#allocation2]
        %v547 = vld [vmem:[%s546] sm:$0xff]
        %v548 = vld [vmem:[%s546 + $0x8] sm:$0xff]
        %v550 = vsel %vm232, %v545, 0
        %552 = vmatprep.subr.mxu0 %v212
        %553 = vmatpush1.msra.mxu0 %v211
        %554 = vmatprep.subr.mxu0 %v210
        %555 = vmatpush1.msra.mxu0 %v209
        %556 = vmatprep.subr.mxu0 %v208
        %557 = vmatpush1.msra.mxu0 %v207
        %558 = vmatprep.subr.mxu0 %v206
        %559 = vmatpush1.msra.mxu0 %v205
        %560 = vmatprep.subr.mxu0 %v204
        %561 = vmatpush1.msra.mxu0 %v203
        %562 = vmatprep.subr.mxu0 %v202
        %563 = vmatpush1.msra.mxu0 %v201
        %564 = vmatprep.subr.mxu0 %v200
        %565 = vmatpush1.msra.mxu0 %v199
        %566 = vmatprep.subr.mxu0 %v198
        %567 = vmatpush1.msra.mxu0 %v197
        %568 = vmatprep.subr.mxu0 %v196
        %569 = vmatpush1.msra.mxu0 %v195
        %570 = vmatprep.subr.mxu0 %v194
        %571 = vmatpush1.msra.mxu0 %v193
        %572 = vmatprep.subr.mxu0 %v192
        %573 = vmatpush1.msra.mxu0 %v191
        %574 = vmatprep.subr.mxu0 %v190
        %575 = vmatpush1.msra.mxu0 %v189
        %576 = vmatprep.subr.mxu0 %v188
        %577 = vmatpush1.msra.mxu0 %v187
        %578 = vmatprep.subr.mxu0 %v186
        %579 = vmatpush1.msra.mxu0 %v185
        %580 = vmatprep.subr.mxu0 %v184
        %581 = vmatpush1.msra.mxu0 %v183
        %582 = vmatprep.subr.mxu0 %v182
        %583 = vmatpush1.msra.mxu0 %v181
        %584 = vmatprep.subr.mxu0 0.0
        %585 = vmatpush2.msra.mxu0 0.0
        %586 = vmatprep.subr.mxu0 0.0
        %587 = vmatpush2.msra.mxu0 0.0
        %588 = vmatprep.subr.mxu0 0.0
        %589 = vmatpush2.msra.mxu0 0.0
        %590 = vmatprep.subr.mxu0 0.0
        %591 = vmatpush2.msra.mxu0 0.0
        %592 = vmatprep.subr.mxu0 0.0
        %593 = vmatpush2.msra.mxu0 0.0
        %594 = vmatprep.subr.mxu0 0.0
        %595 = vmatpush2.msra.mxu0 0.0
        %596 = vmatprep.subr.mxu0 0.0
        %597 = vmatpush2.msra.mxu0 0.0
        %598 = vmatprep.subr.mxu0 0.0
        %599 = vmatpush2.msra.mxu0 0.0
        %600 = vmatprep.subr.mxu0 %v228
        %601 = vmatpush2.msra.mxu0 %v227
        %602 = vmatprep.subr.mxu0 %v226
        %603 = vmatpush2.msra.mxu0 %v225
        %604 = vmatprep.subr.mxu0 %v224
        %605 = vmatpush2.msra.mxu0 %v223
        %606 = vmatprep.subr.mxu0 %v222
        %607 = vmatpush2.msra.mxu0 %v221
        %608 = vmatprep.subr.mxu0 %v220
        %609 = vmatpush2.msra.mxu0 %v219
        %610 = vmatprep.subr.mxu0 %v218
        %611 = vmatpush2.msra.mxu0 %v217
        %612 = vmatprep.subr.mxu0 %v216
        %613 = vmatpush2.msra.mxu0 %v215
        %614 = vmatprep.subr.mxu0 %v214
        %615 = vmatpush2.msra.mxu0 %v213
        %616 = vmatprep.mubr.f32.mxu0 %v550
        %617 = vmatmul.mubr.f32.gmra.mxu0 %v544
        %v618 = vpop.f32.mrf.mxu0
        %v619 = vadd.f32 %v547, %v618
        %v620 = vpop.f32.mrf.mxu0
        %v621 = vadd.f32 %v548, %v620
        %622 = vdwg.mxu0
        %v623 = vtanh.pop %v619
        %v624 = vtanh.pop %v621
        %s625 = scalar_lea.vmem %s152, 96 [#allocation2]
        %v626 = vld [vmem:[%s625] sm:$0xff]
        %v627 = vld [vmem:[%s625 + $0x8] sm:$0xff]
        %v629 = vsel %vm232, %v624, 0
        %631 = vmatprep.subr.mxu0 %v212
        %632 = vmatpush1.msra.mxu0 %v211
        %633 = vmatprep.subr.mxu0 %v210
        %634 = vmatpush1.msra.mxu0 %v209
        %635 = vmatprep.subr.mxu0 %v208
        %636 = vmatpush1.msra.mxu0 %v207
        %637 = vmatprep.subr.mxu0 %v206
        %638 = vmatpush1.msra.mxu0 %v205
        %639 = vmatprep.subr.mxu0 %v204
        %640 = vmatpush1.msra.mxu0 %v203
        %641 = vmatprep.subr.mxu0 %v202
        %642 = vmatpush1.msra.mxu0 %v201
        %643 = vmatprep.subr.mxu0 %v200
        %644 = vmatpush1.msra.mxu0 %v199
        %645 = vmatprep.subr.mxu0 %v198
        %646 = vmatpush1.msra.mxu0 %v197
        %647 = vmatprep.subr.mxu0 %v196
        %648 = vmatpush1.msra.mxu0 %v195
        %649 = vmatprep.subr.mxu0 %v194
        %650 = vmatpush1.msra.mxu0 %v193
        %651 = vmatprep.subr.mxu0 %v192
        %652 = vmatpush1.msra.mxu0 %v191
        %653 = vmatprep.subr.mxu0 %v190
        %654 = vmatpush1.msra.mxu0 %v189
        %655 = vmatprep.subr.mxu0 %v188
        %656 = vmatpush1.msra.mxu0 %v187
        %657 = vmatprep.subr.mxu0 %v186
        %658 = vmatpush1.msra.mxu0 %v185
        %659 = vmatprep.subr.mxu0 %v184
        %660 = vmatpush1.msra.mxu0 %v183
        %661 = vmatprep.subr.mxu0 %v182
        %662 = vmatpush1.msra.mxu0 %v181
        %663 = vmatprep.subr.mxu0 0.0
        %664 = vmatpush2.msra.mxu0 0.0
        %665 = vmatprep.subr.mxu0 0.0
        %666 = vmatpush2.msra.mxu0 0.0
        %667 = vmatprep.subr.mxu0 0.0
        %668 = vmatpush2.msra.mxu0 0.0
        %669 = vmatprep.subr.mxu0 0.0
        %670 = vmatpush2.msra.mxu0 0.0
        %671 = vmatprep.subr.mxu0 0.0
        %672 = vmatpush2.msra.mxu0 0.0
        %673 = vmatprep.subr.mxu0 0.0
        %674 = vmatpush2.msra.mxu0 0.0
        %675 = vmatprep.subr.mxu0 0.0
        %676 = vmatpush2.msra.mxu0 0.0
        %677 = vmatprep.subr.mxu0 0.0
        %678 = vmatpush2.msra.mxu0 0.0
        %679 = vmatprep.subr.mxu0 %v228
        %680 = vmatpush2.msra.mxu0 %v227
        %681 = vmatprep.subr.mxu0 %v226
        %682 = vmatpush2.msra.mxu0 %v225
        %683 = vmatprep.subr.mxu0 %v224
        %684 = vmatpush2.msra.mxu0 %v223
        %685 = vmatprep.subr.mxu0 %v222
        %686 = vmatpush2.msra.mxu0 %v221
        %687 = vmatprep.subr.mxu0 %v220
        %688 = vmatpush2.msra.mxu0 %v219
        %689 = vmatprep.subr.mxu0 %v218
        %690 = vmatpush2.msra.mxu0 %v217
        %691 = vmatprep.subr.mxu0 %v216
        %692 = vmatpush2.msra.mxu0 %v215
        %693 = vmatprep.subr.mxu0 %v214
        %694 = vmatpush2.msra.mxu0 %v213
        %695 = vmatprep.mubr.f32.mxu0 %v629
        %696 = vmatmul.mubr.f32.gmra.mxu0 %v623
        %v697 = vpop.f32.mrf.mxu0
        %v698 = vadd.f32 %v626, %v697
        %v699 = vpop.f32.mrf.mxu0
        %v700 = vadd.f32 %v627, %v699
        %701 = vdwg.mxu0
        %v702 = vtanh.pop %v698
        %v703 = vtanh.pop %v700
        %s704 = scalar_lea.vmem %s152, 112 [#allocation2]
        %v705 = vld [vmem:[%s704] sm:$0xff]
        %v706 = vld [vmem:[%s704 + $0x8] sm:$0xff]
        %v708 = vsel %vm232, %v703, 0
        %710 = vmatprep.subr.mxu0 %v212
        %711 = vmatpush1.msra.mxu0 %v211
        %712 = vmatprep.subr.mxu0 %v210
        %713 = vmatpush1.msra.mxu0 %v209
        %714 = vmatprep.subr.mxu0 %v208
        %715 = vmatpush1.msra.mxu0 %v207
        %716 = vmatprep.subr.mxu0 %v206
        %717 = vmatpush1.msra.mxu0 %v205
        %718 = vmatprep.subr.mxu0 %v204
        %719 = vmatpush1.msra.mxu0 %v203
        %720 = vmatprep.subr.mxu0 %v202
        %721 = vmatpush1.msra.mxu0 %v201
        %722 = vmatprep.subr.mxu0 %v200
        %723 = vmatpush1.msra.mxu0 %v199
        %724 = vmatprep.subr.mxu0 %v198
        %725 = vmatpush1.msra.mxu0 %v197
        %726 = vmatprep.subr.mxu0 %v196
        %727 = vmatpush1.msra.mxu0 %v195
        %728 = vmatprep.subr.mxu0 %v194
        %729 = vmatpush1.msra.mxu0 %v193
        %730 = vmatprep.subr.mxu0 %v192
        %731 = vmatpush1.msra.mxu0 %v191
        %732 = vmatprep.subr.mxu0 %v190
        %733 = vmatpush1.msra.mxu0 %v189
        %734 = vmatprep.subr.mxu0 %v188
        %735 = vmatpush1.msra.mxu0 %v187
        %736 = vmatprep.subr.mxu0 %v186
        %737 = vmatpush1.msra.mxu0 %v185
        %738 = vmatprep.subr.mxu0 %v184
        %739 = vmatpush1.msra.mxu0 %v183
        %740 = vmatprep.subr.mxu0 %v182
        %741 = vmatpush1.msra.mxu0 %v181
        %742 = vmatprep.subr.mxu0 0.0
        %743 = vmatpush2.msra.mxu0 0.0
        %744 = vmatprep.subr.mxu0 0.0
        %745 = vmatpush2.msra.mxu0 0.0
        %746 = vmatprep.subr.mxu0 0.0
        %747 = vmatpush2.msra.mxu0 0.0
        %748 = vmatprep.subr.mxu0 0.0
        %749 = vmatpush2.msra.mxu0 0.0
        %750 = vmatprep.subr.mxu0 0.0
        %751 = vmatpush2.msra.mxu0 0.0
        %752 = vmatprep.subr.mxu0 0.0
        %753 = vmatpush2.msra.mxu0 0.0
        %754 = vmatprep.subr.mxu0 0.0
        %755 = vmatpush2.msra.mxu0 0.0
        %756 = vmatprep.subr.mxu0 0.0
        %757 = vmatpush2.msra.mxu0 0.0
        %758 = vmatprep.subr.mxu0 %v228
        %759 = vmatpush2.msra.mxu0 %v227
        %760 = vmatprep.subr.mxu0 %v226
        %761 = vmatpush2.msra.mxu0 %v225
        %762 = vmatprep.subr.mxu0 %v224
        %763 = vmatpush2.msra.mxu0 %v223
        %764 = vmatprep.subr.mxu0 %v222
        %765 = vmatpush2.msra.mxu0 %v221
        %766 = vmatprep.subr.mxu0 %v220
        %767 = vmatpush2.msra.mxu0 %v219
        %768 = vmatprep.subr.mxu0 %v218
        %769 = vmatpush2.msra.mxu0 %v217
        %770 = vmatprep.subr.mxu0 %v216
        %771 = vmatpush2.msra.mxu0 %v215
        %772 = vmatprep.subr.mxu0 %v214
        %773 = vmatpush2.msra.mxu0 %v213
        %774 = vmatprep.mubr.f32.mxu0 %v708
        %775 = vmatmul.mubr.f32.gmra.mxu0 %v702
        %v776 = vpop.f32.mrf.mxu0
        %v777 = vadd.f32 %v705, %v776
        %v778 = vpop.f32.mrf.mxu0
        %v779 = vadd.f32 %v706, %v778
        %780 = vdwg.mxu0
        %v781 = vtanh.pop %v777
        %v782 = vtanh.pop %v779
        %s783 = scalar_lea.vmem %s152, 128 [#allocation2]
        %v784 = vld [vmem:[%s783] sm:$0xff]
        %v785 = vld [vmem:[%s783 + $0x8] sm:$0xff]
        %v787 = vsel %vm232, %v782, 0
        %789 = vmatprep.subr.mxu0 %v212
        %790 = vmatpush1.msra.mxu0 %v211
        %791 = vmatprep.subr.mxu0 %v210
        %792 = vmatpush1.msra.mxu0 %v209
        %793 = vmatprep.subr.mxu0 %v208
        %794 = vmatpush1.msra.mxu0 %v207
        %795 = vmatprep.subr.mxu0 %v206
        %796 = vmatpush1.msra.mxu0 %v205
        %797 = vmatprep.subr.mxu0 %v204
        %798 = vmatpush1.msra.mxu0 %v203
        %799 = vmatprep.subr.mxu0 %v202
        %800 = vmatpush1.msra.mxu0 %v201
        %801 = vmatprep.subr.mxu0 %v200
        %802 = vmatpush1.msra.mxu0 %v199
        %803 = vmatprep.subr.mxu0 %v198
        %804 = vmatpush1.msra.mxu0 %v197
        %805 = vmatprep.subr.mxu0 %v196
        %806 = vmatpush1.msra.mxu0 %v195
        %807 = vmatprep.subr.mxu0 %v194
        %808 = vmatpush1.msra.mxu0 %v193
        %809 = vmatprep.subr.mxu0 %v192
        %810 = vmatpush1.msra.mxu0 %v191
        %811 = vmatprep.subr.mxu0 %v190
        %812 = vmatpush1.msra.mxu0 %v189
        %813 = vmatprep.subr.mxu0 %v188
        %814 = vmatpush1.msra.mxu0 %v187
        %815 = vmatprep.subr.mxu0 %v186
        %816 = vmatpush1.msra.mxu0 %v185
        %817 = vmatprep.subr.mxu0 %v184
        %818 = vmatpush1.msra.mxu0 %v183
        %819 = vmatprep.subr.mxu0 %v182
        %820 = vmatpush1.msra.mxu0 %v181
        %821 = vmatprep.subr.mxu0 0.0
        %822 = vmatpush2.msra.mxu0 0.0
        %823 = vmatprep.subr.mxu0 0.0
        %824 = vmatpush2.msra.mxu0 0.0
        %825 = vmatprep.subr.mxu0 0.0
        %826 = vmatpush2.msra.mxu0 0.0
        %827 = vmatprep.subr.mxu0 0.0
        %828 = vmatpush2.msra.mxu0 0.0
        %829 = vmatprep.subr.mxu0 0.0
        %830 = vmatpush2.msra.mxu0 0.0
        %831 = vmatprep.subr.mxu0 0.0
        %832 = vmatpush2.msra.mxu0 0.0
        %833 = vmatprep.subr.mxu0 0.0
        %834 = vmatpush2.msra.mxu0 0.0
        %835 = vmatprep.subr.mxu0 0.0
        %836 = vmatpush2.msra.mxu0 0.0
        %837 = vmatprep.subr.mxu0 %v228
        %838 = vmatpush2.msra.mxu0 %v227
        %839 = vmatprep.subr.mxu0 %v226
        %840 = vmatpush2.msra.mxu0 %v225
        %841 = vmatprep.subr.mxu0 %v224
        %842 = vmatpush2.msra.mxu0 %v223
        %843 = vmatprep.subr.mxu0 %v222
        %844 = vmatpush2.msra.mxu0 %v221
        %845 = vmatprep.subr.mxu0 %v220
        %846 = vmatpush2.msra.mxu0 %v219
        %847 = vmatprep.subr.mxu0 %v218
        %848 = vmatpush2.msra.mxu0 %v217
        %849 = vmatprep.subr.mxu0 %v216
        %850 = vmatpush2.msra.mxu0 %v215
        %851 = vmatprep.subr.mxu0 %v214
        %852 = vmatpush2.msra.mxu0 %v213
        %853 = vmatprep.mubr.f32.mxu0 %v787
        %854 = vmatmul.mubr.f32.gmra.mxu0 %v781
        %v855 = vpop.f32.mrf.mxu0
        %v856 = vadd.f32 %v784, %v855
        %v857 = vpop.f32.mrf.mxu0
        %v858 = vadd.f32 %v785, %v857
        %859 = vdwg.mxu0
        %v860 = vtanh.pop %v856
        %v861 = vtanh.pop %v858
        %s862 = scalar_lea.vmem %s152, 144 [#allocation2]
        %v863 = vld [vmem:[%s862 + $0x8] sm:$0xff]
        %v865 = vsel %vm232, %v861, 0
        %867 = vmatprep.subr.mxu0 %v212
        %868 = vmatpush1.msra.mxu0 %v211
        %869 = vmatprep.subr.mxu0 %v210
        %870 = vmatpush1.msra.mxu0 %v209
        %871 = vmatprep.subr.mxu0 %v208
        %872 = vmatpush1.msra.mxu0 %v207
        %873 = vmatprep.subr.mxu0 %v206
        %874 = vmatpush1.msra.mxu0 %v205
        %875 = vmatprep.subr.mxu0 %v204
        %876 = vmatpush1.msra.mxu0 %v203
        %877 = vmatprep.subr.mxu0 %v202
        %878 = vmatpush1.msra.mxu0 %v201
        %879 = vmatprep.subr.mxu0 %v200
        %880 = vmatpush1.msra.mxu0 %v199
        %881 = vmatprep.subr.mxu0 %v198
        %882 = vmatpush1.msra.mxu0 %v197
        %883 = vmatprep.subr.mxu0 %v196
        %884 = vmatpush1.msra.mxu0 %v195
        %885 = vmatprep.subr.mxu0 %v194
        %886 = vmatpush1.msra.mxu0 %v193
        %887 = vmatprep.subr.mxu0 %v192
        %888 = vmatpush1.msra.mxu0 %v191
        %889 = vmatprep.subr.mxu0 %v190
        %890 = vmatpush1.msra.mxu0 %v189
        %891 = vmatprep.subr.mxu0 %v188
        %892 = vmatpush1.msra.mxu0 %v187
        %893 = vmatprep.subr.mxu0 %v186
        %894 = vmatpush1.msra.mxu0 %v185
        %895 = vmatprep.subr.mxu0 %v184
        %896 = vmatpush1.msra.mxu0 %v183
        %897 = vmatprep.subr.mxu0 %v182
        %898 = vmatpush1.msra.mxu0 %v181
        %899 = vmatprep.subr.mxu0 0.0
        %900 = vmatpush2.msra.mxu0 0.0
        %901 = vmatprep.subr.mxu0 0.0
        %902 = vmatpush2.msra.mxu0 0.0
        %903 = vmatprep.subr.mxu0 0.0
        %904 = vmatpush2.msra.mxu0 0.0
        %905 = vmatprep.subr.mxu0 0.0
        %906 = vmatpush2.msra.mxu0 0.0
        %907 = vmatprep.subr.mxu0 0.0
        %908 = vmatpush2.msra.mxu0 0.0
        %909 = vmatprep.subr.mxu0 0.0
        %910 = vmatpush2.msra.mxu0 0.0
        %911 = vmatprep.subr.mxu0 0.0
        %912 = vmatpush2.msra.mxu0 0.0
        %913 = vmatprep.subr.mxu0 0.0
        %914 = vmatpush2.msra.mxu0 0.0
        %915 = vmatprep.subr.mxu0 %v228
        %916 = vmatpush2.msra.mxu0 %v227
        %917 = vmatprep.subr.mxu0 %v226
        %918 = vmatpush2.msra.mxu0 %v225
        %919 = vmatprep.subr.mxu0 %v224
        %920 = vmatpush2.msra.mxu0 %v223
        %921 = vmatprep.subr.mxu0 %v222
        %922 = vmatpush2.msra.mxu0 %v221
        %923 = vmatprep.subr.mxu0 %v220
        %924 = vmatpush2.msra.mxu0 %v219
        %925 = vmatprep.subr.mxu0 %v218
        %926 = vmatpush2.msra.mxu0 %v217
        %927 = vmatprep.subr.mxu0 %v216
        %928 = vmatpush2.msra.mxu0 %v215
        %929 = vmatprep.subr.mxu0 %v214
        %930 = vmatpush2.msra.mxu0 %v213
        %931 = vmatprep.mubr.f32.mxu0 %v865
        %932 = vmatmul.mubr.f32.gmra.mxu0 %v860
        %v933 = vpop.f32.mrf.mxu0
        %v934 = vpop.f32.mrf.mxu0
        %v935 = vadd.f32 %v863, %v934
        %936 = vdwg.mxu0
        %v937 = vtanh.pop %v935
        %938 = vst.msk [vmem:[%s176] sm:$0xff] %vm232, %v937
        %s939 = sand.u32 %s75, 1
        %s940 = scalar_lea.sflag [#allocation4], %s939
        %s941 = sand.u32 %s75, 1
        %s942 = smul.addr %s941, 8
        %s943 = scalar_lea.vmem [#allocation7], %s942
        // Predicated region
        $region37: #{tpu_custom_call.1} parent=27 // pred_check
          %p944 = pneg %p85
        $region38: #{tpu_custom_call.1} parent=27 // pred_check_branch
          %946 = sbr.rel (%p944) target = $region40
        $region39: #{tpu_custom_call.1} parent=27 // pred_region
          %s948 = ssub.s32 128, 128
          %949 = vsyncadd %s940, %s948
          %s950 = smul.addr %s20, 128
          %s951 = scalar_lea.hbm %s2, %s950
          %s953 = sshll.u32 %s943, 4
          %s954 = int_to_ptr.vmem [resolvable:$true] %s953
          %956 = dma.vmem_to_hbm [thread:$0]  %s954, 128, %s951, %s940
        $region40: #{tpu_custom_call.1} parent=27 // pred_fallthru
          _
      $region28: #{tpu_custom_call.1} parent=5 // pred_fallthru
        _
      %p957 = scmp.le.s32.totalorder 2, %s15
      // Predicated region
      $region41: #{tpu_custom_call.1} parent=5 // pred_check
        %p958 = pneg %p957
      $region42: #{tpu_custom_call.1} parent=5 // pred_check_branch
        %960 = sbr.rel (%p958) target = $region44
      $region43: #{tpu_custom_call.1} parent=5 // pred_region
        %s961 = ssub.s32 %s15, 2
        // Predicated region
        $region45: #{tpu_custom_call.1} parent=43 // pred_check
          %p962 = pneg %p91
        $region46: #{tpu_custom_call.1} parent=43 // pred_check_branch
          %964 = sbr.rel (%p962) target = $region48
        $region47: #{tpu_custom_call.1} parent=43 // pred_region
          %s965 = sand.u32 %s76, 1
          %s966 = scalar_lea.sflag [#allocation4], %s965
          %s967 = sand.u32 %s76, 1
          %s968 = smul.addr %s967, 8
          %s969 = scalar_lea.vmem [#allocation7], %s968
          %970 = dma.done %s966, 128
        $region48: #{tpu_custom_call.1} parent=43 // pred_fallthru
          _
      $region44: #{tpu_custom_call.1} parent=5 // pred_fallthru
        _
    $region6: #{tpu_custom_call.1} parent=1 // loop_footer
      %s19 = sadd.s32 1, %s15
    $region7: #{tpu_custom_call.1} parent=1 // loop_footer_branch
      %14 = sbr.rel target = $region3
    $region8: #{tpu_custom_call.1} parent=1 // loop_exit
      _
    %971 = vsyncpa [#allocation3], 1
    %s972 = scalar_lea.sflag [#allocation3], 1
    %973 = vsyncpa %s972, 1
    %974 = vsyncpa [#allocation6], 1
    %975 = vsyncpa [#allocation4], 1
    %s976 = scalar_lea.sflag [#allocation4], 1
    %977 = vsyncpa %s976, 1

</llo_original>
